<compile_context>
chip_gen: v5e
topology: v5e:2x2
jax: 0.10.0
libtpu: 0.0.40
codegen_flags: <defaults>
</compile_context>

<pallas_src>
import functools

import jax
import jax.numpy as jnp
from jax.experimental import pallas as pl
from jax.experimental.pallas import tpu as pltpu


def _round_up(a: int, b: int) -> int:
    return ((a + b - 1) // b) * b


def pownet_kernel(x_ref, w1_ref, b1_ref, w2_ref, b2_ref, o_ref):
    # x_ref: (18, TB)  w1_ref: (16, 18)  b1_ref: (16, 1)
    # w2_ref: (10, 16) b2_ref: (10, 1)   o_ref: (10, TB)
    x = x_ref[...]

    # fc1 + relu   (batch on the lane axis -> lane-dense vregs, few MXU pushes)
    h = jnp.dot(w1_ref[...], x, preferred_element_type=jnp.float32)   # (16, TB)
    h = jnp.maximum(h + b1_ref[...], 0.0)

    # fc2
    y = jnp.dot(w2_ref[...], h, preferred_element_type=jnp.float32)   # (10, TB)
    y = y + b2_ref[...]

    # sigmoid(y) * 2 + 1  ==  tanh(y / 2) + 2   (single EUP op)
    o_ref[...] = (jnp.tanh(y * 0.5) + 2.0).astype(o_ref.dtype)


@functools.partial(jax.jit, static_argnames=("tb",))
def pownet_forward(x, w1, b1, w2, b2, *, tb: int = 1024):
    """x: (B, 18); w1: (16, 18); b1: (16,); w2: (10, 16); b2: (10,) -> (B, 10)."""
    B, f_in = x.shape
    f_hid, _ = w1.shape
    f_out, _ = w2.shape

    # Tile size: multiple of 128 lanes; don't over-inflate for small batches.
    TB = min(tb, _round_up(B, 128))
    B_pad = _round_up(B, TB)
    grid = (B_pad // TB,)

    # Feature-major activations, padded batch (padded cols compute on zeros).
    x_fm = jnp.zeros((f_in, B_pad), jnp.float32).at[:, :B].set(x.T)

    b1c = b1.reshape(f_hid, 1).astype(jnp.float32)
    b2c = b2.reshape(f_out, 1).astype(jnp.float32)
    w1f = w1.astype(jnp.float32)
    w2f = w2.astype(jnp.float32)

    cost = pl.CostEstimate(
        flops=2 * B_pad * (f_in * f_hid + f_hid * f_out),
        transcendentals=B_pad * f_out,
        bytes_accessed=4 * (B_pad * (f_in + f_out)
                            + f_in * f_hid + f_hid * f_out + f_hid + f_out),
    )

    out_fm = pl.pallas_call(
        pownet_kernel,
        out_shape=jax.ShapeDtypeStruct((f_out, B_pad), jnp.float32),
        grid_spec=pltpu.PrefetchScalarGridSpec(
            num_scalar_prefetch=0,
            grid=grid,
            in_specs=[
                pl.BlockSpec((f_in, TB), lambda i: (0, i)),     # x tile (streamed)
                pl.BlockSpec(w1f.shape, lambda i: (0, 0)),      # resident in VMEM
                pl.BlockSpec(b1c.shape, lambda i: (0, 0)),      # resident in VMEM
                pl.BlockSpec(w2f.shape, lambda i: (0, 0)),      # resident in VMEM
                pl.BlockSpec(b2c.shape, lambda i: (0, 0)),      # resident in VMEM
            ],
            out_specs=pl.BlockSpec((f_out, TB), lambda i: (0, i)),
        ),
        compiler_params=pltpu.CompilerParams(
            dimension_semantics=("parallel",)),
        cost_estimate=cost,
    )(x_fm, w1f, b1c, w2f, b2c)

    # Back to batch-major, drop padded columns.
    return out_fm.T[:B, :]


def init_params(key):
    # Mimic nn.Linear init: uniform(-1/sqrt(fan_in), 1/sqrt(fan_in)),
    # torch storage layout W: (out_features, in_features), b: (out_features,).
    k1, k2, k3, k4 = jax.random.split(key, 4)
    lim1 = 1.0 / jnp.sqrt(18.0)
    lim2 = 1.0 / jnp.sqrt(16.0)
    w1 = jax.random.uniform(k1, (16, 18), jnp.float32, -lim1, lim1)
    b1 = jax.random.uniform(k2, (16,), jnp.float32, -lim1, lim1)
    w2 = jax.random.uniform(k3, (10, 16), jnp.float32, -lim2, lim2)
    b2 = jax.random.uniform(k4, (10,), jnp.float32, -lim2, lim2)
    return w1, b1, w2, b2


if __name__ == "__main__":
    key = jax.random.PRNGKey(0)
    kx, kp = jax.random.split(key)

    B = 8
    x = jax.random.normal(kx, (B, 18), jnp.float32)
    w1, b1, w2, b2 = init_params(kp)

    out = pownet_forward(x, w1, b1, w2, b2)
    out = jax.block_until_ready(out)

    # Reference in plain JAX (same math as the torch module).
    ref = jax.nn.sigmoid(jnp.maximum(x @ w1.T + b1, 0.0) @ w2.T + b2) * 2.0 + 1.0
    assert out.shape == (B, 10)
    assert jnp.allclose(out, ref, atol=1e-5, rtol=1e-5), \
        float(jnp.max(jnp.abs(out - ref)))

    print("KERNEL_OK")
</pallas_src>

<mosaic_0001>
module attributes {stable_mosaic.version = 11 : i64} {
  func.func @pownet_kernel(%arg0: i32, %arg1: memref<18x128xf32, #tpu.memory_space<vmem>>, %arg2: memref<16x18xf32, #tpu.memory_space<vmem>>, %arg3: memref<16x1xf32, #tpu.memory_space<vmem>>, %arg4: memref<10x16xf32, #tpu.memory_space<vmem>>, %arg5: memref<10x1xf32, #tpu.memory_space<vmem>>, %arg6: memref<10x128xf32, #tpu.memory_space<vmem>>) attributes {dimension_semantics = [#tpu.dimension_semantics<parallel>], iteration_bounds = array<i64: 1>, scalar_prefetch = 0 : i64, scratch_operands = 0 : i64, tpu.core_type = #tpu.core_type<tc>, window_params = [{transform_indices = @transform_0, window_bounds = array<i64: 18, 128>}, {pipeline_mode = #tpu.pipeline_mode<synchronous>, transform_indices = @transform_1, window_bounds = array<i64: 16, 18>}, {pipeline_mode = #tpu.pipeline_mode<synchronous>, transform_indices = @transform_2, window_bounds = array<i64: 16, 1>}, {pipeline_mode = #tpu.pipeline_mode<synchronous>, transform_indices = @transform_3, window_bounds = array<i64: 10, 16>}, {pipeline_mode = #tpu.pipeline_mode<synchronous>, transform_indices = @transform_4, window_bounds = array<i64: 10, 1>}, {transform_indices = @transform_5, window_bounds = array<i64: 10, 128>}]} {
    %c0 = arith.constant 0 : index
    %c0_0 = arith.constant 0 : index
    %0 = vector.load %arg1[%c0, %c0_0] : memref<18x128xf32, #tpu.memory_space<vmem>>, vector<18x128xf32>
    %c0_1 = arith.constant 0 : index
    %c0_2 = arith.constant 0 : index
    %1 = vector.load %arg2[%c0_1, %c0_2] : memref<16x18xf32, #tpu.memory_space<vmem>>, vector<16x18xf32>
    %cst = arith.constant dense<0.000000e+00> : vector<16x128xf32>
    %2 = tpu.matmul %1, %0, %cst {dimension_numbers = #tpu.dot_dimension_numbers<[1], [0], [0], [1], [0, 0, 1, 1], [], []>} : vector<16x18xf32>, vector<18x128xf32>, vector<16x128xf32> -> vector<16x128xf32>
    %c0_3 = arith.constant 0 : index
    %c0_4 = arith.constant 0 : index
    %3 = vector.load %arg3[%c0_3, %c0_4] : memref<16x1xf32, #tpu.memory_space<vmem>>, vector<16x1xf32>
    %4 = vector.broadcast %3 : vector<16x1xf32> to vector<16x128xf32>
    %5 = arith.addf %2, %4 : vector<16x128xf32>
    %cst_5 = arith.constant 0.000000e+00 : f32
    %6 = vector.broadcast %cst_5 : f32 to vector<16x128xf32>
    %7 = arith.maximumf %5, %6 : vector<16x128xf32>
    %c0_6 = arith.constant 0 : index
    %c0_7 = arith.constant 0 : index
    %8 = vector.load %arg4[%c0_6, %c0_7] : memref<10x16xf32, #tpu.memory_space<vmem>>, vector<10x16xf32>
    %cst_8 = arith.constant dense<0.000000e+00> : vector<10x128xf32>
    %9 = tpu.matmul %8, %7, %cst_8 {dimension_numbers = #tpu.dot_dimension_numbers<[1], [0], [0], [1], [0, 0, 1, 1], [], []>} : vector<10x16xf32>, vector<16x128xf32>, vector<10x128xf32> -> vector<10x128xf32>
    %c0_9 = arith.constant 0 : index
    %c0_10 = arith.constant 0 : index
    %10 = vector.load %arg5[%c0_9, %c0_10] : memref<10x1xf32, #tpu.memory_space<vmem>>, vector<10x1xf32>
    %11 = vector.broadcast %10 : vector<10x1xf32> to vector<10x128xf32>
    %12 = arith.addf %9, %11 : vector<10x128xf32>
    %cst_11 = arith.constant 5.000000e-01 : f32
    %13 = vector.broadcast %cst_11 : f32 to vector<10x128xf32>
    %14 = arith.mulf %12, %13 : vector<10x128xf32>
    %15 = math.tanh %14 : vector<10x128xf32>
    %cst_12 = arith.constant 2.000000e+00 : f32
    %16 = vector.broadcast %cst_12 : f32 to vector<10x128xf32>
    %17 = arith.addf %15, %16 : vector<10x128xf32>
    %c0_13 = arith.constant 0 : index
    %c0_14 = arith.constant 0 : index
    %18 = vector.load %arg6[%c0_13, %c0_14] : memref<10x128xf32, #tpu.memory_space<vmem>>, vector<10x128xf32>
    tpu.vector_store %arg6[%c0_13, %c0_14], %17 {strides = array<i32>} : memref<10x128xf32, #tpu.memory_space<vmem>>, vector<10x128xf32>,
    return
  }
  func.func @transform_0(%arg0: i32) -> (i32, i32) {
    %c0_i32 = arith.constant 0 : i32
    %c0_i32_0 = arith.constant 0 : i32
    return %c0_i32, %arg0 : i32, i32
  }
  func.func @transform_1(%arg0: i32) -> (i32, i32) {
    %c0_i32 = arith.constant 0 : i32
    %c0_i32_0 = arith.constant 0 : i32
    %c0_i32_1 = arith.constant 0 : i32
    return %c0_i32, %c0_i32_0 : i32, i32
  }
  func.func @transform_2(%arg0: i32) -> (i32, i32) {
    %c0_i32 = arith.constant 0 : i32
    %c0_i32_0 = arith.constant 0 : i32
    %c0_i32_1 = arith.constant 0 : i32
    return %c0_i32, %c0_i32_0 : i32, i32
  }
  func.func @transform_3(%arg0: i32) -> (i32, i32) {
    %c0_i32 = arith.constant 0 : i32
    %c0_i32_0 = arith.constant 0 : i32
    %c0_i32_1 = arith.constant 0 : i32
    return %c0_i32, %c0_i32_0 : i32, i32
  }
  func.func @transform_4(%arg0: i32) -> (i32, i32) {
    %c0_i32 = arith.constant 0 : i32
    %c0_i32_0 = arith.constant 0 : i32
    %c0_i32_1 = arith.constant 0 : i32
    return %c0_i32, %c0_i32_0 : i32, i32
  }
  func.func @transform_5(%arg0: i32) -> (i32, i32) {
    %c0_i32 = arith.constant 0 : i32
    %c0_i32_0 = arith.constant 0 : i32
    return %c0_i32, %arg0 : i32, i32
  }
}

</mosaic_0001>

<llo_original>
// kernel: pownet_forward.1
$region0: #{pownet_forward.1}
  #allocation0 [shape = 'u32[]', space=smem, size = 0x4, offset = 0x4, fixed_abs, tag = 'smem constant byte address 0x4 - core index']
  #allocation1 [shape = 'u32[72,128]{1,0:T(1,128)}', space=vmem, size = 0x9000, scoped, tag = 'internal scratch']
  %s0 = inlined_call_operand.vmem [shape: f32[18,128], index: 0, kind: input, shape index: {}]
  %s1 = inlined_call_operand.vmem [shape: f32[16,18], index: 1, kind: input, shape index: {}]
  %s2 = inlined_call_operand.vmem [shape: f32[16,1], index: 2, kind: input, shape index: {}]
  %s3 = inlined_call_operand.vmem [shape: f32[10,16], index: 3, kind: input, shape index: {}]
  %s4 = inlined_call_operand.vmem [shape: f32[10,1], index: 4, kind: input, shape index: {}]
  %s5 = inlined_call_operand.vmem [shape: f32[10,128], index: 5, kind: output, shape index: {}]
  %s6 = sld [smem:[#allocation0]]
  $region30: #{pownet_forward.1} parent=0
    _
  %s8 = ssub.s32 1, %s6
  %s9 = scalar_select 0, %s8, %s6
  // Predicated region
  $region2: #{pownet_forward.1} parent=0 // pred_check
    _
  $region3: #{pownet_forward.1} parent=0 // pred_check_branch
    %11 = sbr.rel (0) target = $region5
  $region4: #{pownet_forward.1} parent=0 // pred_region
    _
  $region5: #{pownet_forward.1} parent=0 // pred_fallthru
    _
  // Predicated region
  $region6: #{pownet_forward.1} parent=0 // pred_check
    _
  $region7: #{pownet_forward.1} parent=0 // pred_check_branch
    %13 = sbr.rel (0) target = $region9
  $region8: #{pownet_forward.1} parent=0 // pred_region
    _
  $region9: #{pownet_forward.1} parent=0 // pred_fallthru
    _
  // Predicated region
  $region10: #{pownet_forward.1} parent=0 // pred_check
    _
  $region11: #{pownet_forward.1} parent=0 // pred_check_branch
    %15 = sbr.rel (0) target = $region13
  $region12: #{pownet_forward.1} parent=0 // pred_region
    _
  $region13: #{pownet_forward.1} parent=0 // pred_fallthru
    _
  // Predicated region
  $region14: #{pownet_forward.1} parent=0 // pred_check
    _
  $region15: #{pownet_forward.1} parent=0 // pred_check_branch
    %17 = sbr.rel (0) target = $region17
  $region16: #{pownet_forward.1} parent=0 // pred_region
    _
  $region17: #{pownet_forward.1} parent=0 // pred_fallthru
    _
  // Predicated region
  $region18: #{pownet_forward.1} parent=0 // pred_check
    _
  $region19: #{pownet_forward.1} parent=0 // pred_check_branch
    %19 = sbr.rel (0) target = $region21
  $region20: #{pownet_forward.1} parent=0 // pred_region
    _
  $region21: #{pownet_forward.1} parent=0 // pred_fallthru
    _
  %v20 = vld [vmem:[%s0] sm:$0xff]
  %v21 = vld [vmem:[%s0 + $0x8] sm:$0xff]
  %v22 = vld [vmem:[%s0 + $0x10] sm:$0x3]
  %v23 = vld [vmem:[%s1] sm:$0xff]
  %v24 = vld [vmem:[%s1 + $0x8] sm:$0xff]
  %v25 = vld [vmem:[%s2] sm:$0xff]
  %v26 = vld [vmem:[%s2 + $0x8] sm:$0xff]
  %28 = vset.pattern.permute.xlu0 0
  %29 = vperm.xlu0 %28, %v25
  %v30 = vpop.permute.xlu0 %29
  %33 = vset.pattern.permute.xlu0 0
  %34 = vperm.xlu0 %33, %v26
  %v35 = vpop.permute.xlu0 %34
  %vm37 = vcmask 146432
  %v39 = vsel %vm37, %v23, 0
  %v42 = vsel %vm37, %v24, 0
  %vm44 = vcmask 1041408
  %v46 = vsel %vm44, %v22, 0
  %48 = vmatpush.msra.mxu0 0.0
  %49 = vmatpush.msra.mxu0 0.0
  %50 = vmatpush.msra.mxu0 0.0
  %51 = vmatpush.msra.mxu0 0.0
  %52 = vmatpush.msra.mxu0 0.0
  %53 = vmatpush.msra.mxu0 0.0
  %54 = vmatpush.msra.mxu0 0.0
  %55 = vmatpush.msra.mxu0 0.0
  %56 = vmatpush.msra.mxu0 0.0
  %57 = vmatpush.msra.mxu0 0.0
  %58 = vmatpush.msra.mxu0 0.0
  %59 = vmatpush.msra.mxu0 0.0
  %60 = vmatpush.msra.mxu0 0.0
  %61 = vmatpush.msra.mxu0 %v46
  %62 = vmatpush.msra.mxu0 %v21
  %63 = vmatpush.msra.mxu0 %v20
  %64 = vmatmul.f32.gmra.mxu0 %v39
  %v65 = vpop.f32.mrf.mxu0
  %v66 = vadd.f32 %v30, %v65
  %67 = vmatmul.f32.gmra.mxu0 %v42
  %v68 = vpop.f32.mrf.mxu0
  %v69 = vadd.f32 %v35, %v68
  %70 = vdwg.mxu0
  %v71 = vmax.f32 %v66, 0.0
  %v72 = vmax.f32 %v69, 0.0
  %v73 = vld [vmem:[%s3] sm:$0xff]
  %v74 = vld [vmem:[%s3 + $0x8] sm:$0x3]
  %v75 = vld [vmem:[%s4] sm:$0xff]
  %v76 = vld [vmem:[%s4 + $0x8] sm:$0x3]
  %78 = vset.pattern.permute.xlu0 0
  %79 = vperm.xlu0 %78, %v75
  %v80 = vpop.permute.xlu0 %79
  %83 = vset.pattern.permute.xlu0 0
  %84 = vperm.xlu0 %83, %v76
  %v85 = vpop.permute.xlu0 %84
  %vm87 = vcmask 130048
  %v89 = vsel %vm87, %v73, 0
  %v92 = vsel %vm87, %v74, 0
  %94 = vmatpush.msra.mxu0 0.0
  %95 = vmatpush.msra.mxu0 0.0
  %96 = vmatpush.msra.mxu0 0.0
  %97 = vmatpush.msra.mxu0 0.0
  %98 = vmatpush.msra.mxu0 0.0
  %99 = vmatpush.msra.mxu0 0.0
  %100 = vmatpush.msra.mxu0 0.0
  %101 = vmatpush.msra.mxu0 0.0
  %102 = vmatpush.msra.mxu0 0.0
  %103 = vmatpush.msra.mxu0 0.0
  %104 = vmatpush.msra.mxu0 0.0
  %105 = vmatpush.msra.mxu0 0.0
  %106 = vmatpush.msra.mxu0 0.0
  %107 = vmatpush.msra.mxu0 0.0
  %108 = vmatpush.msra.mxu0 %v72
  %109 = vmatpush.msra.mxu0 %v71
  %110 = vmatmul.f32.gmra.mxu0 %v89
  %v111 = vpop.f32.mrf.mxu0
  %v112 = vadd.f32 %v80, %v111
  %113 = vmatmul.f32.gmra.mxu0 %v92
  %v114 = vpop.f32.mrf.mxu0
  %v115 = vadd.f32 %v85, %v114
  %116 = vdwg.mxu0
  %v117 = vmul.f32 %v112, 0.5
  %v118 = vmul.f32 %v115, 0.5
  %v119 = vtanh.pop %v117
  %v120 = vtanh.pop %v118
  %v121 = vadd.f32 %v119, 2.0
  %v122 = vadd.f32 %v120, 2.0
  %123 = vst [vmem:[%s5] sm:$0xff] %v121
  %124 = vst [vmem:[%s5 + $0x8] sm:$0x3] %v122
  // Predicated region
  $region22: #{pownet_forward.1} parent=0 // pred_check
    _
  $region23: #{pownet_forward.1} parent=0 // pred_check_branch
    %126 = sbr.rel (0) target = $region25
  $region24: #{pownet_forward.1} parent=0 // pred_region
    _
  $region25: #{pownet_forward.1} parent=0 // pred_fallthru
    _
  // Predicated region
  $region26: #{pownet_forward.1} parent=0 // pred_check
    _
  $region27: #{pownet_forward.1} parent=0 // pred_check_branch
    %128 = sbr.rel (0) target = $region29
  $region28: #{pownet_forward.1} parent=0 // pred_region
    _
  $region29: #{pownet_forward.1} parent=0 // pred_fallthru
    _

</llo_original>
